<compile_context>
chip_gen: v6e
topology: v6e:2x2x1
jax: 0.10.0
libtpu: 0.0.40
codegen_flags: <defaults>
</compile_context>

<pallas_src>
import functools

import numpy as np

import jax
import jax.numpy as jnp
from jax.experimental import pallas as pl
from jax.experimental.pallas import tpu as pltpu

LANE = 128


def _round_up(n, m):
    return ((n + m - 1) // m) * m


def _vmem_capacity_bytes():
    """Rough per-core VMEM capacity: 64 MiB on v7x, 128 MiB on v5e/v6e (and v4/v5p)."""
    try:
        kind = jax.devices()[0].device_kind.lower()
    except Exception:
        return 64 * 1024 * 1024
    if "v7" in kind or "7x" in kind:
        return 64 * 1024 * 1024
    return 128 * 1024 * 1024


def _vmem_bytes_estimate(tm, obs_dim, d_model, e_dim, out_itemsize, weight_bufs):
    """Estimate of kernel VMEM footprint (tiles laid out on (8,128) granularity)."""
    def tile(r, c, itemsize):
        return _round_up(max(r, 1), 8) * _round_up(max(c, 1), LANE) * itemsize

    streams = 2 * tile(tm, obs_dim, 4)              # x tiles (input dtype <= f32), double buffered
    streams += 2 * tile(tm, 1, 4)                   # padding-mask tiles
    streams += 2 * tile(tm, e_dim, out_itemsize)    # output tiles
    weights = weight_bufs * (tile(obs_dim, d_model, 2) + tile(d_model, d_model, 2)
                             + tile(d_model, e_dim, 2)
                             + 2 * tile(1, d_model, 4) + tile(1, e_dim, 4))
    interm = 2 * tile(tm, d_model, 4)               # emb, h (f32)
    interm += 2 * tile(tm, d_model, 2)              # bf16 copies of emb, h for the MXU
    interm += tile(tm, obs_dim, 2)                  # bf16 copy of x
    return streams + weights + interm


def _choose_tm(M, obs_dim, d_model, e_dim, out_itemsize, vmem_capacity):
    """Largest row tile that fits the per-chip VMEM budget, then adapted to M."""
    budget = int(vmem_capacity * 0.55)              # headroom for compiler temporaries
    tm = 8
    for cand in (1024, 768, 512, 384, 256, 192, 128, 64, 32, 16, 8):
        # Size with double-buffered weights so the estimate stays valid even if the
        # Buffered(1) request falls back to the default pipeline.
        if _vmem_bytes_estimate(cand, obs_dim, d_model, e_dim,
                                out_itemsize, weight_bufs=2) <= budget:
            tm = cand
            break
    if M <= tm:
        return _round_up(max(M, 8), 8)              # single step, <= 7 padded rows
    # Prefer >= 8 grid steps when M allows (pipelining + both v7x TensorCores busy).
    return min(tm, max(64, _round_up(-(-M // 8), 8)))


def _explainer_kernel(*refs, apply_mask):
    """Fused forward: embed(tanh) -> [mask] -> hidden(relu) -> final(identity)."""
    if apply_mask:
        (x_ref, mask_ref, we_ref, be_ref, w1_ref, b1_ref, wf_ref, bf_ref, o_ref) = refs
    else:
        (x_ref, we_ref, be_ref, w1_ref, b1_ref, wf_ref, bf_ref, o_ref) = refs

    # Hoisted bias reads (per-tile constants), f32 epilogue adds.
    be = be_ref[...]                                # (1, d_p)
    b1 = b1_ref[...]                                # (1, d_p)
    bf = bf_ref[...]                                # (1, e_dim)

    # x arrives in its storage dtype (no wrapper repack pass); cast to bf16 for the
    # MXU inside the kernel — cheap VPU work hidden under the matmuls.
    x = x_ref[...].astype(jnp.bfloat16)             # (tm, obs_dim)

    # TransformLayer: obs -> d_model, tanh activation (f32 accumulate + f32 tanh).
    emb = jnp.tanh(
        jnp.dot(x, we_ref[...], preferred_element_type=jnp.float32) + be
    )

    # Padding mask (1 = valid, 0 = pad), broadcast [tm, 1] over the lane axis.
    if apply_mask:
        emb = emb * mask_ref[...]

    # net hidden layer: d_model -> d_model, ReLU.
    h = jnp.maximum(
        jnp.dot(emb.astype(jnp.bfloat16), w1_ref[...],
                preferred_element_type=jnp.float32) + b1,
        0.0,
    )

    # final layer: d_model -> e_dim, act_fn='none'.
    out = jnp.dot(h.astype(jnp.bfloat16), wf_ref[...],
                  preferred_element_type=jnp.float32) + bf
    o_ref[...] = out.astype(o_ref.dtype)


@functools.partial(
    jax.jit,
    static_argnames=("tm", "apply_mask", "single_buffer_weights", "out_dtype"))
def _forward_impl(x, padding_mask, we, be, w1, b1, wf, bf, *,
                  tm, apply_mask, single_buffer_weights, out_dtype):
    B, S, obs_dim = x.shape
    M = B * S
    d_model = we.shape[1]
    e_dim = wf.shape[1]
    d_p = _round_up(d_model, LANE)                  # lane-dense hidden dim (weights only)
    m_p = _round_up(M, tm)

    # Flatten positions; pad rows only when M is not tile-aligned (no-op otherwise).
    x2 = x.reshape(M, obs_dim)
    if m_p != M:
        x2 = jnp.pad(x2, ((0, m_p - M), (0, 0)))

    operands = [x2]
    in_specs = [pl.BlockSpec((tm, obs_dim), lambda i: (i, 0))]       # x rows (true obs_dim)

    if apply_mask:
        mask2 = padding_mask.reshape(M, 1).astype(jnp.float32)
        if m_p != M:
            mask2 = jnp.pad(mask2, ((0, m_p - M), (0, 0)))
        operands.append(mask2)
        in_specs.append(pl.BlockSpec((tm, 1), lambda i: (i, 0)))     # mask rows

    # Weights: bf16 MXU operands, d_model zero-padded to a lane multiple.  Padding is
    # exact: padded columns give tanh(0)=0 / relu(0)=0 and contribute nothing.
    we_p = jnp.pad(we, ((0, 0), (0, d_p - d_model))).astype(jnp.bfloat16)
    be_p = jnp.pad(be, ((0, 0), (0, d_p - d_model))).astype(jnp.float32)
    w1_p = jnp.pad(w1, ((0, d_p - d_model), (0, d_p - d_model))).astype(jnp.bfloat16)
    b1_p = jnp.pad(b1, ((0, 0), (0, d_p - d_model))).astype(jnp.float32)
    wf_p = jnp.pad(wf, ((0, d_p - d_model), (0, 0))).astype(jnp.bfloat16)
    bf_p = bf.astype(jnp.float32)

    # Constant blocks (index_map == (0,0) for every step): request single buffering.
    wkw = {"pipeline_mode": pl.Buffered(1)} if single_buffer_weights else {}

    def wspec(shape):
        return pl.BlockSpec(shape, lambda i: (0, 0), **wkw)

    operands += [we_p, be_p, w1_p, b1_p, wf_p, bf_p]
    in_specs += [wspec((obs_dim, d_p)), wspec((1, d_p)),
                 wspec((d_p, d_p)), wspec((1, d_p)),
                 wspec((d_p, e_dim)), wspec((1, e_dim))]

    # VMEM limit derived from the actual buffer sizes (+50% headroom), clamped so the
    # demo/small configs stay at the conservative 32 MiB default-compatible budget.
    est = _vmem_bytes_estimate(tm, obs_dim, d_p, e_dim,
                               np.dtype(out_dtype).itemsize,
                               weight_bufs=1 if single_buffer_weights else 2)
    vmem_limit = int(min(100 * 1024 * 1024, max(32 * 1024 * 1024, est * 3 // 2)))

    out = pl.pallas_call(
        functools.partial(_explainer_kernel, apply_mask=apply_mask),
        out_shape=jax.ShapeDtypeStruct((m_p, e_dim), out_dtype),
        grid_spec=pltpu.PrefetchScalarGridSpec(
            num_scalar_prefetch=0,
            grid=(m_p // tm,),
            in_specs=in_specs,
            # True e_dim lane width: for narrow outputs this is ~16x less HBM write
            # than padding to 128, the dominant stream in the mem-bound regime.
            out_specs=pl.BlockSpec((tm, e_dim), lambda i: (i, 0)),
        ),
        compiler_params=pltpu.CompilerParams(
            dimension_semantics=("parallel",),
            vmem_limit_bytes=vmem_limit,
        ),
    )(*operands)

    return out[:M].reshape(B, S, e_dim)


# Tri-state cache: None = untested, True/False = does this build accept pl.Buffered(1)?
_SINGLE_BUFFER_OK = [None]


def explainer_forward(x, padding_mask, params, out_dtype=jnp.bfloat16):
    """x: [B, S, obs_dim]; padding_mask: [B, S] (1=valid, 0=pad) or None.

    Returns [B, S, e_dim] in `out_dtype` (bf16 by default: the output is the dominant
    HBM write stream; pass jnp.float32 if the caller needs full precision).
    """
    we, wf = params["we"], params["wf"]
    B, S, obs_dim = x.shape
    M = B * S
    d_model = we.shape[1]
    e_dim = wf.shape[1]

    out_dtype = np.dtype(out_dtype)
    tm = _choose_tm(M, obs_dim, d_model, e_dim, out_dtype.itemsize,
                    _vmem_capacity_bytes())

    apply_mask = padding_mask is not None
    args = (x, padding_mask, params["we"], params["be"], params["w1"],
            params["b1"], params["wf"], params["bf"])
    kwargs = dict(tm=tm, apply_mask=apply_mask, out_dtype=out_dtype)

    if _SINGLE_BUFFER_OK[0] is None:
        try:
            out = _forward_impl(*args, single_buffer_weights=True, **kwargs)
            jax.block_until_ready(out)      # surface compile/runtime errors here
            _SINGLE_BUFFER_OK[0] = True
            return out
        except Exception:
            # pipeline_mode=pl.Buffered(1) not supported on this JAX/Mosaic build;
            # fall back to default double-buffered constant blocks (correct, more VMEM).
            _SINGLE_BUFFER_OK[0] = False
    return _forward_impl(*args, single_buffer_weights=_SINGLE_BUFFER_OK[0], **kwargs)


def init_params(key, obs_dim, d_model, e_dim, std=0.02):
    """init_weights(init_type='normal'): N(0, std) weights, zero biases."""
    k0, k1, k2 = jax.random.split(key, 3)
    return {
        "we": std * jax.random.normal(k0, (obs_dim, d_model), jnp.float32),
        "be": jnp.zeros((1, d_model), jnp.float32),
        "w1": std * jax.random.normal(k1, (d_model, d_model), jnp.float32),
        "b1": jnp.zeros((1, d_model), jnp.float32),
        "wf": std * jax.random.normal(k2, (d_model, e_dim), jnp.float32),
        "bf": jnp.zeros((1, e_dim), jnp.float32),
    }


def _reference(x, padding_mask, params):
    """Pure-JAX f32 reference for correctness check."""
    emb = jnp.tanh(x @ params["we"] + params["be"])
    if padding_mask is not None:
        emb = emb * padding_mask[..., None].astype(jnp.float32)
    h = jnp.maximum(emb @ params["w1"] + params["b1"], 0.0)
    return h @ params["wf"] + params["bf"]


if __name__ == "__main__":
    # config: obs_shape=(16,), d_model=32, e_dim=8; batch=2, seq=8
    B, S, obs_dim, d_model, e_dim = 2, 8, 16, 32, 8

    key = jax.random.PRNGKey(0)
    kx, kp = jax.random.split(key)
    x = jax.random.normal(kx, (B, S, obs_dim), jnp.float32)
    # mask out the last 2 positions of each sequence
    padding_mask = jnp.concatenate(
        [jnp.ones((B, S - 2), jnp.float32), jnp.zeros((B, 2), jnp.float32)], axis=1
    )

    params = init_params(kp, obs_dim, d_model, e_dim)

    # Masked path (default bf16 output).
    out = jax.block_until_ready(explainer_forward(x, padding_mask, params))
    assert out.shape == (B, S, e_dim), out.shape
    ref = _reference(x, padding_mask, params)
    err = float(jnp.max(jnp.abs(out.astype(jnp.float32) - ref)))
    # Tolerances loosened for bf16 MXU operands + bf16 output (f32 accumulation).
    assert jnp.allclose(out.astype(jnp.float32), ref, atol=5e-3, rtol=5e-2), err

    # Specialized no-mask path.
    out_nm = jax.block_until_ready(explainer_forward(x, None, params))
    ref_nm = _reference(x, None, params)
    err_nm = float(jnp.max(jnp.abs(out_nm.astype(jnp.float32) - ref_nm)))
    assert jnp.allclose(out_nm.astype(jnp.float32), ref_nm, atol=5e-3, rtol=5e-2), err_nm

    print("KERNEL_OK")
</pallas_src>

<mosaic_0001>
module attributes {stable_mosaic.version = 11 : i64} {
  func.func @_explainer_kernel(%arg0: i32, %arg1: memref<16x16xf32, #tpu.memory_space<vmem>>, %arg2: memref<16x1xf32, #tpu.memory_space<vmem>>, %arg3: memref<16x128xbf16, #tpu.memory_space<vmem>>, %arg4: memref<1x128xf32, #tpu.memory_space<vmem>>, %arg5: memref<128x128xbf16, #tpu.memory_space<vmem>>, %arg6: memref<1x128xf32, #tpu.memory_space<vmem>>, %arg7: memref<128x8xbf16, #tpu.memory_space<vmem>>, %arg8: memref<1x8xf32, #tpu.memory_space<vmem>>, %arg9: memref<16x8xbf16, #tpu.memory_space<vmem>>) attributes {dimension_semantics = [#tpu.dimension_semantics<parallel>], iteration_bounds = array<i64: 1>, scalar_prefetch = 0 : i64, scratch_operands = 0 : i64, tpu.core_type = #tpu.core_type<tc>, window_params = [{transform_indices = @transform_0, window_bounds = array<i64: 16, 16>}, {transform_indices = @transform_1, window_bounds = array<i64: 16, 1>}, {pipeline_mode = #tpu.pipeline_mode<synchronous>, transform_indices = @transform_2, window_bounds = array<i64: 16, 128>}, {pipeline_mode = #tpu.pipeline_mode<synchronous>, transform_indices = @transform_3, window_bounds = array<i64: 1, 128>}, {pipeline_mode = #tpu.pipeline_mode<synchronous>, transform_indices = @transform_4, window_bounds = array<i64: 128, 128>}, {pipeline_mode = #tpu.pipeline_mode<synchronous>, transform_indices = @transform_5, window_bounds = array<i64: 1, 128>}, {pipeline_mode = #tpu.pipeline_mode<synchronous>, transform_indices = @transform_6, window_bounds = array<i64: 128, 8>}, {pipeline_mode = #tpu.pipeline_mode<synchronous>, transform_indices = @transform_7, window_bounds = array<i64: 1, 8>}, {transform_indices = @transform_8, window_bounds = array<i64: 16, 8>}]} {
    %c0 = arith.constant 0 : index
    %c0_0 = arith.constant 0 : index
    %0 = vector.load %arg4[%c0, %c0_0] : memref<1x128xf32, #tpu.memory_space<vmem>>, vector<1x128xf32>
    %c0_1 = arith.constant 0 : index
    %c0_2 = arith.constant 0 : index
    %1 = vector.load %arg6[%c0_1, %c0_2] : memref<1x128xf32, #tpu.memory_space<vmem>>, vector<1x128xf32>
    %c0_3 = arith.constant 0 : index
    %c0_4 = arith.constant 0 : index
    %2 = vector.load %arg8[%c0_3, %c0_4] : memref<1x8xf32, #tpu.memory_space<vmem>>, vector<1x8xf32>
    %c0_5 = arith.constant 0 : index
    %c0_6 = arith.constant 0 : index
    %3 = vector.load %arg1[%c0_5, %c0_6] : memref<16x16xf32, #tpu.memory_space<vmem>>, vector<16x16xf32>
    %4 = arith.truncf %3 : vector<16x16xf32> to vector<16x16xbf16>
    %c0_7 = arith.constant 0 : index
    %c0_8 = arith.constant 0 : index
    %5 = vector.load %arg3[%c0_7, %c0_8] : memref<16x128xbf16, #tpu.memory_space<vmem>>, vector<16x128xbf16>
    %cst = arith.constant dense<0.000000e+00> : vector<16x128xf32>
    %6 = tpu.matmul %4, %5, %cst {dimension_numbers = #tpu.dot_dimension_numbers<[1], [0], [0], [1], [0, 0, 1, 1], [], []>} : vector<16x16xbf16>, vector<16x128xbf16>, vector<16x128xf32> -> vector<16x128xf32>
    %7 = vector.broadcast %0 : vector<1x128xf32> to vector<16x128xf32>
    %8 = arith.addf %6, %7 : vector<16x128xf32>
    %9 = math.tanh %8 : vector<16x128xf32>
    %c0_9 = arith.constant 0 : index
    %c0_10 = arith.constant 0 : index
    %10 = vector.load %arg2[%c0_9, %c0_10] : memref<16x1xf32, #tpu.memory_space<vmem>>, vector<16x1xf32>
    %11 = vector.broadcast %10 : vector<16x1xf32> to vector<16x128xf32>
    %12 = arith.mulf %9, %11 : vector<16x128xf32>
    %13 = arith.truncf %12 : vector<16x128xf32> to vector<16x128xbf16>
    %c0_11 = arith.constant 0 : index
    %c0_12 = arith.constant 0 : index
    %14 = vector.load %arg5[%c0_11, %c0_12] : memref<128x128xbf16, #tpu.memory_space<vmem>>, vector<128x128xbf16>
    %cst_13 = arith.constant dense<0.000000e+00> : vector<16x128xf32>
    %15 = tpu.matmul %13, %14, %cst_13 {dimension_numbers = #tpu.dot_dimension_numbers<[1], [0], [0], [1], [0, 0, 1, 1], [], []>} : vector<16x128xbf16>, vector<128x128xbf16>, vector<16x128xf32> -> vector<16x128xf32>
    %16 = vector.broadcast %1 : vector<1x128xf32> to vector<16x128xf32>
    %17 = arith.addf %15, %16 : vector<16x128xf32>
    %cst_14 = arith.constant 0.000000e+00 : f32
    %18 = vector.broadcast %cst_14 : f32 to vector<16x128xf32>
    %19 = arith.maximumf %17, %18 : vector<16x128xf32>
    %20 = arith.truncf %19 : vector<16x128xf32> to vector<16x128xbf16>
    %c0_15 = arith.constant 0 : index
    %c0_16 = arith.constant 0 : index
    %21 = vector.load %arg7[%c0_15, %c0_16] : memref<128x8xbf16, #tpu.memory_space<vmem>>, vector<128x8xbf16>
    %cst_17 = arith.constant dense<0.000000e+00> : vector<16x8xf32>
    %22 = tpu.matmul %20, %21, %cst_17 {dimension_numbers = #tpu.dot_dimension_numbers<[1], [0], [0], [1], [0, 0, 1, 1], [], []>} : vector<16x128xbf16>, vector<128x8xbf16>, vector<16x8xf32> -> vector<16x8xf32>
    %23 = vector.broadcast %2 : vector<1x8xf32> to vector<16x8xf32>
    %24 = arith.addf %22, %23 : vector<16x8xf32>
    %25 = arith.truncf %24 : vector<16x8xf32> to vector<16x8xbf16>
    %c0_18 = arith.constant 0 : index
    %c0_19 = arith.constant 0 : index
    %26 = vector.load %arg9[%c0_18, %c0_19] : memref<16x8xbf16, #tpu.memory_space<vmem>>, vector<16x8xbf16>
    tpu.vector_store %arg9[%c0_18, %c0_19], %25 {strides = array<i32>} : memref<16x8xbf16, #tpu.memory_space<vmem>>, vector<16x8xbf16>,
    return
  }
  func.func @transform_0(%arg0: i32) -> (i32, i32) {
    %c0_i32 = arith.constant 0 : i32
    %c0_i32_0 = arith.constant 0 : i32
    return %arg0, %c0_i32 : i32, i32
  }
  func.func @transform_1(%arg0: i32) -> (i32, i32) {
    %c0_i32 = arith.constant 0 : i32
    %c0_i32_0 = arith.constant 0 : i32
    return %arg0, %c0_i32 : i32, i32
  }
  func.func @transform_2(%arg0: i32) -> (i32, i32) {
    %c0_i32 = arith.constant 0 : i32
    %c0_i32_0 = arith.constant 0 : i32
    %c0_i32_1 = arith.constant 0 : i32
    return %c0_i32, %c0_i32_0 : i32, i32
  }
  func.func @transform_3(%arg0: i32) -> (i32, i32) {
    %c0_i32 = arith.constant 0 : i32
    %c0_i32_0 = arith.constant 0 : i32
    %c0_i32_1 = arith.constant 0 : i32
    return %c0_i32, %c0_i32_0 : i32, i32
  }
  func.func @transform_4(%arg0: i32) -> (i32, i32) {
    %c0_i32 = arith.constant 0 : i32
    %c0_i32_0 = arith.constant 0 : i32
    %c0_i32_1 = arith.constant 0 : i32
    return %c0_i32, %c0_i32_0 : i32, i32
  }
  func.func @transform_5(%arg0: i32) -> (i32, i32) {
    %c0_i32 = arith.constant 0 : i32
    %c0_i32_0 = arith.constant 0 : i32
    %c0_i32_1 = arith.constant 0 : i32
    return %c0_i32, %c0_i32_0 : i32, i32
  }
  func.func @transform_6(%arg0: i32) -> (i32, i32) {
    %c0_i32 = arith.constant 0 : i32
    %c0_i32_0 = arith.constant 0 : i32
    %c0_i32_1 = arith.constant 0 : i32
    return %c0_i32, %c0_i32_0 : i32, i32
  }
  func.func @transform_7(%arg0: i32) -> (i32, i32) {
    %c0_i32 = arith.constant 0 : i32
    %c0_i32_0 = arith.constant 0 : i32
    %c0_i32_1 = arith.constant 0 : i32
    return %c0_i32, %c0_i32_0 : i32, i32
  }
  func.func @transform_8(%arg0: i32) -> (i32, i32) {
    %c0_i32 = arith.constant 0 : i32
    %c0_i32_0 = arith.constant 0 : i32
    return %arg0, %c0_i32 : i32, i32
  }
}

module attributes {stable_mosaic.version = 11 : i64} {
  func.func @_explainer_kernel(%arg0: i32, %arg1: memref<16x16xf32, #tpu.memory_space<vmem>>, %arg2: memref<16x1xf32, #tpu.memory_space<vmem>>, %arg3: memref<16x128xbf16, #tpu.memory_space<vmem>>, %arg4: memref<1x128xf32, #tpu.memory_space<vmem>>, %arg5: memref<128x128xbf16, #tpu.memory_space<vmem>>, %arg6: memref<1x128xf32, #tpu.memory_space<vmem>>, %arg7: memref<128x8xbf16, #tpu.memory_space<vmem>>, %arg8: memref<1x8xf32, #tpu.memory_space<vmem>>, %arg9: memref<16x8xbf16, #tpu.memory_space<vmem>>) attributes {dimension_semantics = [#tpu.dimension_semantics<parallel>], iteration_bounds = array<i64: 1>, scalar_prefetch = 0 : i64, scratch_operands = 0 : i64, tpu.core_type = #tpu.core_type<tc>, window_params = [{transform_indices = @transform_0, window_bounds = array<i64: 16, 16>}, {transform_indices = @transform_1, window_bounds = array<i64: 16, 1>}, {pipeline_mode = #tpu.pipeline_mode<synchronous>, transform_indices = @transform_2, window_bounds = array<i64: 16, 128>}, {pipeline_mode = #tpu.pipeline_mode<synchronous>, transform_indices = @transform_3, window_bounds = array<i64: 1, 128>}, {pipeline_mode = #tpu.pipeline_mode<synchronous>, transform_indices = @transform_4, window_bounds = array<i64: 128, 128>}, {pipeline_mode = #tpu.pipeline_mode<synchronous>, transform_indices = @transform_5, window_bounds = array<i64: 1, 128>}, {pipeline_mode = #tpu.pipeline_mode<synchronous>, transform_indices = @transform_6, window_bounds = array<i64: 128, 8>}, {pipeline_mode = #tpu.pipeline_mode<synchronous>, transform_indices = @transform_7, window_bounds = array<i64: 1, 8>}, {transform_indices = @transform_8, window_bounds = array<i64: 16, 8>}]} {
    %c0 = arith.constant 0 : index
    %c0_0 = arith.constant 0 : index
    %0 = vector.load %arg4[%c0, %c0_0] : memref<1x128xf32, #tpu.memory_space<vmem>>, vector<1x128xf32>
    %c0_1 = arith.constant 0 : index
    %c0_2 = arith.constant 0 : index
    %1 = vector.load %arg6[%c0_1, %c0_2] : memref<1x128xf32, #tpu.memory_space<vmem>>, vector<1x128xf32>
    %c0_3 = arith.constant 0 : index
    %c0_4 = arith.constant 0 : index
    %2 = vector.load %arg8[%c0_3, %c0_4] : memref<1x8xf32, #tpu.memory_space<vmem>>, vector<1x8xf32>
    %c0_5 = arith.constant 0 : index
    %c0_6 = arith.constant 0 : index
    %3 = vector.load %arg1[%c0_5, %c0_6] : memref<16x16xf32, #tpu.memory_space<vmem>>, vector<16x16xf32>
    %4 = arith.truncf %3 : vector<16x16xf32> to vector<16x16xbf16>
    %c0_7 = arith.constant 0 : index
    %c0_8 = arith.constant 0 : index
    %5 = vector.load %arg3[%c0_7, %c0_8] : memref<16x128xbf16, #tpu.memory_space<vmem>>, vector<16x128xbf16>
    %cst = arith.constant dense<0.000000e+00> : vector<16x128xf32>
    %6 = tpu.matmul %4, %5, %cst {dimension_numbers = #tpu.dot_dimension_numbers<[1], [0], [0], [1], [0, 0, 1, 1], [], []>} : vector<16x16xbf16>, vector<16x128xbf16>, vector<16x128xf32> -> vector<16x128xf32>
    %7 = vector.broadcast %0 : vector<1x128xf32> to vector<16x128xf32>
    %8 = arith.addf %6, %7 : vector<16x128xf32>
    %9 = math.tanh %8 : vector<16x128xf32>
    %c0_9 = arith.constant 0 : index
    %c0_10 = arith.constant 0 : index
    %10 = vector.load %arg2[%c0_9, %c0_10] : memref<16x1xf32, #tpu.memory_space<vmem>>, vector<16x1xf32>
    %11 = vector.broadcast %10 : vector<16x1xf32> to vector<16x128xf32>
    %12 = arith.mulf %9, %11 : vector<16x128xf32>
    %13 = arith.truncf %12 : vector<16x128xf32> to vector<16x128xbf16>
    %c0_11 = arith.constant 0 : index
    %c0_12 = arith.constant 0 : index
    %14 = vector.load %arg5[%c0_11, %c0_12] : memref<128x128xbf16, #tpu.memory_space<vmem>>, vector<128x128xbf16>
    %cst_13 = arith.constant dense<0.000000e+00> : vector<16x128xf32>
    %15 = tpu.matmul %13, %14, %cst_13 {dimension_numbers = #tpu.dot_dimension_numbers<[1], [0], [0], [1], [0, 0, 1, 1], [], []>} : vector<16x128xbf16>, vector<128x128xbf16>, vector<16x128xf32> -> vector<16x128xf32>
    %16 = vector.broadcast %1 : vector<1x128xf32> to vector<16x128xf32>
    %17 = arith.addf %15, %16 : vector<16x128xf32>
    %cst_14 = arith.constant 0.000000e+00 : f32
    %18 = vector.broadcast %cst_14 : f32 to vector<16x128xf32>
    %19 = arith.maximumf %17, %18 : vector<16x128xf32>
    %20 = arith.truncf %19 : vector<16x128xf32> to vector<16x128xbf16>
    %c0_15 = arith.constant 0 : index
    %c0_16 = arith.constant 0 : index
    %21 = vector.load %arg7[%c0_15, %c0_16] : memref<128x8xbf16, #tpu.memory_space<vmem>>, vector<128x8xbf16>
    %cst_17 = arith.constant dense<0.000000e+00> : vector<16x8xf32>
    %22 = tpu.matmul %20, %21, %cst_17 {dimension_numbers = #tpu.dot_dimension_numbers<[1], [0], [0], [1], [0, 0, 1, 1], [], []>} : vector<16x128xbf16>, vector<128x8xbf16>, vector<16x8xf32> -> vector<16x8xf32>
    %23 = vector.broadcast %2 : vector<1x8xf32> to vector<16x8xf32>
    %24 = arith.addf %22, %23 : vector<16x8xf32>
    %25 = arith.truncf %24 : vector<16x8xf32> to vector<16x8xbf16>
    %c0_18 = arith.constant 0 : index
    %c0_19 = arith.constant 0 : index
    %26 = vector.load %arg9[%c0_18, %c0_19] : memref<16x8xbf16, #tpu.memory_space<vmem>>, vector<16x8xbf16>
    tpu.vector_store %arg9[%c0_18, %c0_19], %25 {strides = array<i32>} : memref<16x8xbf16, #tpu.memory_space<vmem>>, vector<16x8xbf16>,
    return
  }
  func.func @transform_0(%arg0: i32) -> (i32, i32) {
    %c0_i32 = arith.constant 0 : i32
    %c0_i32_0 = arith.constant 0 : i32
    return %arg0, %c0_i32 : i32, i32
  }
  func.func @transform_1(%arg0: i32) -> (i32, i32) {
    %c0_i32 = arith.constant 0 : i32
    %c0_i32_0 = arith.constant 0 : i32
    return %arg0, %c0_i32 : i32, i32
  }
  func.func @transform_2(%arg0: i32) -> (i32, i32) {
    %c0_i32 = arith.constant 0 : i32
    %c0_i32_0 = arith.constant 0 : i32
    %c0_i32_1 = arith.constant 0 : i32
    return %c0_i32, %c0_i32_0 : i32, i32
  }
  func.func @transform_3(%arg0: i32) -> (i32, i32) {
    %c0_i32 = arith.constant 0 : i32
    %c0_i32_0 = arith.constant 0 : i32
    %c0_i32_1 = arith.constant 0 : i32
    return %c0_i32, %c0_i32_0 : i32, i32
  }
  func.func @transform_4(%arg0: i32) -> (i32, i32) {
    %c0_i32 = arith.constant 0 : i32
    %c0_i32_0 = arith.constant 0 : i32
    %c0_i32_1 = arith.constant 0 : i32
    return %c0_i32, %c0_i32_0 : i32, i32
  }
  func.func @transform_5(%arg0: i32) -> (i32, i32) {
    %c0_i32 = arith.constant 0 : i32
    %c0_i32_0 = arith.constant 0 : i32
    %c0_i32_1 = arith.constant 0 : i32
    return %c0_i32, %c0_i32_0 : i32, i32
  }
  func.func @transform_6(%arg0: i32) -> (i32, i32) {
    %c0_i32 = arith.constant 0 : i32
    %c0_i32_0 = arith.constant 0 : i32
    %c0_i32_1 = arith.constant 0 : i32
    return %c0_i32, %c0_i32_0 : i32, i32
  }
  func.func @transform_7(%arg0: i32) -> (i32, i32) {
    %c0_i32 = arith.constant 0 : i32
    %c0_i32_0 = arith.constant 0 : i32
    %c0_i32_1 = arith.constant 0 : i32
    return %c0_i32, %c0_i32_0 : i32, i32
  }
  func.func @transform_8(%arg0: i32) -> (i32, i32) {
    %c0_i32 = arith.constant 0 : i32
    %c0_i32_0 = arith.constant 0 : i32
    return %arg0, %c0_i32 : i32, i32
  }
}

</mosaic_0001>

<llo_original>
// kernel: _forward_impl.1
$region0: #{_forward_impl.1}
  #allocation0 [shape = 'u32[]', space=smem, size = 0x4, offset = 0x4, fixed_abs, tag = 'smem constant byte address 0x4 - core index']
  #allocation1 [shape = 'u32[144,128]{1,0:T(1,128)}', space=vmem, size = 0x12000, scoped, tag = 'internal scratch']
  %s0 = inlined_call_operand.vmem [shape: f32[16,16], index: 0, kind: input, shape index: {}]
  %s1 = inlined_call_operand.vmem [shape: f32[16,1], index: 1, kind: input, shape index: {}]
  %s2 = inlined_call_operand.vmem [shape: bf16[16,128], index: 2, kind: input, shape index: {}]
  %s3 = inlined_call_operand.vmem [shape: f32[1,128], index: 3, kind: input, shape index: {}]
  %s4 = inlined_call_operand.vmem [shape: bf16[128,128], index: 4, kind: input, shape index: {}]
  %s5 = inlined_call_operand.vmem [shape: f32[1,128], index: 5, kind: input, shape index: {}]
  %s6 = inlined_call_operand.vmem [shape: bf16[128,8], index: 6, kind: input, shape index: {}]
  %s7 = inlined_call_operand.vmem [shape: f32[1,8], index: 7, kind: input, shape index: {}]
  %s8 = inlined_call_operand.hbm [shape: bf16[16,8], index: 8, kind: output, shape index: {}]
  %s9 = sld [smem:[#allocation0]]
  $region42: #{_forward_impl.1} parent=0
    _
  %s11 = ssub.s32 1, %s9
  %s12 = scalar_select 0, %s11, %s9
  $region1: #{_forward_impl.1} parent=0
    #allocation2 [shape = 'u8[4096]{0}', space=vmem, size = 0x1000, scoped, tag = 'output window, operand 0, single buffered']
    #allocation3 [shape = 's32[1]{0}', space=sflag, size = 0x4, scoped, tag = 'scoped memory for _forward_impl.1']
    %13 = vsyncpa [#allocation3], 0
    // Predicated region
    $region2: #{_forward_impl.1} parent=1 // pred_check
      _
    $region3: #{_forward_impl.1} parent=1 // pred_check_branch
      %15 = sbr.rel (0) target = $region5
    $region4: #{_forward_impl.1} parent=1 // pred_region
      _
    $region5: #{_forward_impl.1} parent=1 // pred_fallthru
      _
    // Predicated region
    $region6: #{_forward_impl.1} parent=1 // pred_check
      _
    $region7: #{_forward_impl.1} parent=1 // pred_check_branch
      %17 = sbr.rel (0) target = $region9
    $region8: #{_forward_impl.1} parent=1 // pred_region
      _
    $region9: #{_forward_impl.1} parent=1 // pred_fallthru
      _
    // Predicated region
    $region10: #{_forward_impl.1} parent=1 // pred_check
      _
    $region11: #{_forward_impl.1} parent=1 // pred_check_branch
      %19 = sbr.rel (0) target = $region13
    $region12: #{_forward_impl.1} parent=1 // pred_region
      _
    $region13: #{_forward_impl.1} parent=1 // pred_fallthru
      _
    // Predicated region
    $region14: #{_forward_impl.1} parent=1 // pred_check
      _
    $region15: #{_forward_impl.1} parent=1 // pred_check_branch
      %21 = sbr.rel (0) target = $region17
    $region16: #{_forward_impl.1} parent=1 // pred_region
      _
    $region17: #{_forward_impl.1} parent=1 // pred_fallthru
      _
    // Predicated region
    $region18: #{_forward_impl.1} parent=1 // pred_check
      _
    $region19: #{_forward_impl.1} parent=1 // pred_check_branch
      %23 = sbr.rel (0) target = $region21
    $region20: #{_forward_impl.1} parent=1 // pred_region
      _
    $region21: #{_forward_impl.1} parent=1 // pred_fallthru
      _
    // Predicated region
    $region22: #{_forward_impl.1} parent=1 // pred_check
      _
    $region23: #{_forward_impl.1} parent=1 // pred_check_branch
      %25 = sbr.rel (0) target = $region25
    $region24: #{_forward_impl.1} parent=1 // pred_region
      _
    $region25: #{_forward_impl.1} parent=1 // pred_fallthru
      _
    // Predicated region
    $region26: #{_forward_impl.1} parent=1 // pred_check
      _
    $region27: #{_forward_impl.1} parent=1 // pred_check_branch
      %27 = sbr.rel (0) target = $region29
    $region28: #{_forward_impl.1} parent=1 // pred_region
      _
    $region29: #{_forward_impl.1} parent=1 // pred_fallthru
      _
    // Predicated region
    $region30: #{_forward_impl.1} parent=1 // pred_check
      _
    $region31: #{_forward_impl.1} parent=1 // pred_check_branch
      %29 = sbr.rel (0) target = $region33
    $region32: #{_forward_impl.1} parent=1 // pred_region
      _
    $region33: #{_forward_impl.1} parent=1 // pred_fallthru
      _
    %v31 = vld [vmem:[%s3] sm:$0x1]
    %v32 = vld [vmem:[%s5] sm:$0x1]
    %v33 = vld [vmem:[%s7] sm:$0x1]
    %v34 = vld [vmem:[%s0] sm:$0xff]
    %v35 = vld [vmem:[%s0 + $0x8] sm:$0xff]
    %v36 = vpack.c.bf16 %v35, %v34
    %v37 = vld [vmem:[%s2] sm:$0xf]
    %v38 = vld [vmem:[%s2 + $0x4] sm:$0xf]
    %v40 = vlaneseq
    %v41 = vshrl.u32 %v40, 7
    %v42 = vsub.s32 0, %v41
    %v43 = vrot.slane %v31, %v42
    %v47 = vunpack.c.l.b16 %v37
    %v48 = vunpack.c.l.b16 %v38
    %v49 = vpack.c.b16 %v48, %v47
    %vm51 = vcmask 130048
    %v53 = vsel %vm51, %v36, 0
    %55 = vmatprep.subr.bf16.mxu0 0
    %56 = vmatpush1.bf16.msra.mxu0 0
    %57 = vmatprep.subr.bf16.mxu0 0
    %58 = vmatpush1.bf16.msra.mxu0 0
    %59 = vmatprep.subr.bf16.mxu0 0
    %60 = vmatpush1.bf16.msra.mxu0 0
    %61 = vmatprep.subr.bf16.mxu0 0
    %62 = vmatpush1.bf16.msra.mxu0 0
    %63 = vmatprep.subr.bf16.mxu0 0
    %64 = vmatpush1.bf16.msra.mxu0 0
    %65 = vmatprep.subr.bf16.mxu0 0
    %66 = vmatpush1.bf16.msra.mxu0 0
    %67 = vmatprep.subr.bf16.mxu0 0
    %68 = vmatpush1.bf16.msra.mxu0 0
    %69 = vmatprep.subr.bf16.mxu0 0
    %70 = vmatpush1.bf16.msra.mxu0 %v49
    %71 = vmatprep.subr.bf16.mxu0 0
    %72 = vmatpush2.bf16.msra.mxu0 0
    %73 = vmatprep.subr.bf16.mxu0 0
    %74 = vmatpush2.bf16.msra.mxu0 0
    %75 = vmatprep.subr.bf16.mxu0 0
    %76 = vmatpush2.bf16.msra.mxu0 0
    %77 = vmatprep.subr.bf16.mxu0 0
    %78 = vmatpush2.bf16.msra.mxu0 0
    %79 = vmatprep.subr.bf16.mxu0 0
    %80 = vmatpush2.bf16.msra.mxu0 0
    %81 = vmatprep.subr.bf16.mxu0 0
    %82 = vmatpush2.bf16.msra.mxu0 0
    %83 = vmatprep.subr.bf16.mxu0 0
    %84 = vmatpush2.bf16.msra.mxu0 0
    %85 = vmatprep.subr.bf16.mxu0 0
    %86 = vmatpush2.bf16.msra.mxu0 0
    %87 = vmatprep.mubr.bf16.mxu0 0
    %88 = vmatmul.mubr.bf16.gmra.mxu0 %v53
    %v89 = vpop.f32.mrf.mxu0
    %v90 = vadd.f32 %v43, %v89
    %v91 = vpop.f32.mrf.mxu0
    %v92 = vpop.f32.mrf.mxu0
    %v93 = vadd.f32 %v43, %v92
    %v94 = vpop.f32.mrf.mxu0
    %95 = vdwg.mxu0
    %v96 = vtanh.pop %v90
    %v97 = vtanh.pop %v93
    %v98 = vld [vmem:[%s1] sm:$0xff]
    %v99 = vld [vmem:[%s1 + $0x8] sm:$0xff]
    %101 = vset.pattern.permute.xlu0 0
    %102 = vperm.xlu0 %101, %v98
    %v103 = vpop.permute.xlu0 %102
    %106 = vset.pattern.permute.xlu0 0
    %107 = vperm.xlu0 %106, %v99
    %v108 = vpop.permute.xlu0 %107
    %v110 = vmul.f32 %v96, %v103
    %v111 = vmul.f32 %v97, %v108
    %v112 = vpack.c.bf16 %v111, %v110
    %v113 = vld [vmem:[%s4] sm:$0xf]
    %v114 = vld [vmem:[%s4 + $0x4] sm:$0xf]
    %v115 = vld [vmem:[%s4 + $0x8] sm:$0xf]
    %v116 = vld [vmem:[%s4 + $0xc] sm:$0xf]
    %v117 = vld [vmem:[%s4 + $0x10] sm:$0xf]
    %v118 = vld [vmem:[%s4 + $0x14] sm:$0xf]
    %v119 = vld [vmem:[%s4 + $0x18] sm:$0xf]
    %v120 = vld [vmem:[%s4 + $0x1c] sm:$0xf]
    %v121 = vld [vmem:[%s4 + $0x20] sm:$0xf]
    %v122 = vld [vmem:[%s4 + $0x24] sm:$0xf]
    %v123 = vld [vmem:[%s4 + $0x28] sm:$0xf]
    %v124 = vld [vmem:[%s4 + $0x2c] sm:$0xf]
    %v125 = vld [vmem:[%s4 + $0x30] sm:$0xf]
    %v126 = vld [vmem:[%s4 + $0x34] sm:$0xf]
    %v127 = vld [vmem:[%s4 + $0x38] sm:$0xf]
    %v128 = vld [vmem:[%s4 + $0x3c] sm:$0xf]
    %v130 = vlaneseq
    %v131 = vshrl.u32 %v130, 7
    %v132 = vsub.s32 0, %v131
    %v133 = vrot.slane %v32, %v132
    %v151 = vunpack.c.l.b16 %v113
    %v152 = vunpack.c.l.b16 %v114
    %v153 = vunpack.c.l.b16 %v115
    %v154 = vunpack.c.l.b16 %v116
    %v155 = vunpack.c.l.b16 %v117
    %v156 = vunpack.c.l.b16 %v118
    %v157 = vunpack.c.l.b16 %v119
    %v158 = vunpack.c.l.b16 %v120
    %v159 = vunpack.c.l.b16 %v121
    %v160 = vunpack.c.l.b16 %v122
    %v161 = vunpack.c.l.b16 %v123
    %v162 = vunpack.c.l.b16 %v124
    %v163 = vunpack.c.l.b16 %v125
    %v164 = vunpack.c.l.b16 %v126
    %v165 = vunpack.c.l.b16 %v127
    %v166 = vunpack.c.l.b16 %v128
    %v167 = vpack.c.b16 %v152, %v151
    %v168 = vpack.c.b16 %v154, %v153
    %v169 = vpack.c.b16 %v156, %v155
    %v170 = vpack.c.b16 %v158, %v157
    %v171 = vpack.c.b16 %v160, %v159
    %v172 = vpack.c.b16 %v162, %v161
    %v173 = vpack.c.b16 %v164, %v163
    %v174 = vpack.c.b16 %v166, %v165
    %183 = vmatprep.subr.bf16.mxu0 0
    %184 = vmatpush1.bf16.msra.mxu0 %v174
    %185 = vmatprep.subr.bf16.mxu0 0
    %186 = vmatpush1.bf16.msra.mxu0 %v173
    %187 = vmatprep.subr.bf16.mxu0 0
    %188 = vmatpush1.bf16.msra.mxu0 %v172
    %189 = vmatprep.subr.bf16.mxu0 0
    %190 = vmatpush1.bf16.msra.mxu0 %v171
    %191 = vmatprep.subr.bf16.mxu0 0
    %192 = vmatpush1.bf16.msra.mxu0 %v170
    %193 = vmatprep.subr.bf16.mxu0 0
    %194 = vmatpush1.bf16.msra.mxu0 %v169
    %195 = vmatprep.subr.bf16.mxu0 0
    %196 = vmatpush1.bf16.msra.mxu0 %v168
    %197 = vmatprep.subr.bf16.mxu0 0
    %198 = vmatpush1.bf16.msra.mxu0 %v167
    %199 = vmatprep.subr.bf16.mxu0 0
    %200 = vmatpush2.bf16.msra.mxu0 0
    %201 = vmatprep.subr.bf16.mxu0 0
    %202 = vmatpush2.bf16.msra.mxu0 0
    %203 = vmatprep.subr.bf16.mxu0 0
    %204 = vmatpush2.bf16.msra.mxu0 0
    %205 = vmatprep.subr.bf16.mxu0 0
    %206 = vmatpush2.bf16.msra.mxu0 0
    %207 = vmatprep.subr.bf16.mxu0 0
    %208 = vmatpush2.bf16.msra.mxu0 0
    %209 = vmatprep.subr.bf16.mxu0 0
    %210 = vmatpush2.bf16.msra.mxu0 0
    %211 = vmatprep.subr.bf16.mxu0 0
    %212 = vmatpush2.bf16.msra.mxu0 0
    %213 = vmatprep.subr.bf16.mxu0 0
    %214 = vmatpush2.bf16.msra.mxu0 0
    %215 = vmatprep.mubr.bf16.mxu0 0
    %216 = vmatmul.mubr.bf16.gmra.mxu0 %v112
    %v217 = vpop.f32.mrf.mxu0
    %v218 = vadd.f32 %v133, %v217
    %v219 = vpop.f32.mrf.mxu0
    %v220 = vpop.f32.mrf.mxu0
    %v221 = vadd.f32 %v133, %v220
    %v222 = vpop.f32.mrf.mxu0
    %223 = vdwg.mxu0
    %v224 = vmax.f32 %v218, 0.0
    %v225 = vmax.f32 %v221, 0.0
    %v226 = vpack.c.bf16 %v225, %v224
    %v227 = vld [vmem:[%s6] sm:$0xf]
    %v228 = vld [vmem:[%s6 + $0x4] sm:$0xf]
    %v229 = vld [vmem:[%s6 + $0x8] sm:$0xf]
    %v230 = vld [vmem:[%s6 + $0xc] sm:$0xf]
    %v231 = vld [vmem:[%s6 + $0x10] sm:$0xf]
    %v232 = vld [vmem:[%s6 + $0x14] sm:$0xf]
    %v233 = vld [vmem:[%s6 + $0x18] sm:$0xf]
    %v234 = vld [vmem:[%s6 + $0x1c] sm:$0xf]
    %v235 = vld [vmem:[%s6 + $0x20] sm:$0xf]
    %v236 = vld [vmem:[%s6 + $0x24] sm:$0xf]
    %v237 = vld [vmem:[%s6 + $0x28] sm:$0xf]
    %v238 = vld [vmem:[%s6 + $0x2c] sm:$0xf]
    %v239 = vld [vmem:[%s6 + $0x30] sm:$0xf]
    %v240 = vld [vmem:[%s6 + $0x34] sm:$0xf]
    %v241 = vld [vmem:[%s6 + $0x38] sm:$0xf]
    %v242 = vld [vmem:[%s6 + $0x3c] sm:$0xf]
    %v244 = vlaneseq
    %v245 = vshrl.u32 %v244, 7
    %v246 = vsub.s32 0, %v245
    %v247 = vrot.slane %v33, %v246
    %v265 = vunpack.c.l.b16 %v227
    %v266 = vunpack.c.l.b16 %v228
    %v267 = vunpack.c.l.b16 %v229
    %v268 = vunpack.c.l.b16 %v230
    %v269 = vunpack.c.l.b16 %v231
    %v270 = vunpack.c.l.b16 %v232
    %v271 = vunpack.c.l.b16 %v233
    %v272 = vunpack.c.l.b16 %v234
    %v273 = vunpack.c.l.b16 %v235
    %v274 = vunpack.c.l.b16 %v236
    %v275 = vunpack.c.l.b16 %v237
    %v276 = vunpack.c.l.b16 %v238
    %v277 = vunpack.c.l.b16 %v239
    %v278 = vunpack.c.l.b16 %v240
    %v279 = vunpack.c.l.b16 %v241
    %v280 = vunpack.c.l.b16 %v242
    %v281 = vpack.c.b16 %v266, %v265
    %v282 = vpack.c.b16 %v268, %v267
    %v283 = vpack.c.b16 %v270, %v269
    %v284 = vpack.c.b16 %v272, %v271
    %v285 = vpack.c.b16 %v274, %v273
    %v286 = vpack.c.b16 %v276, %v275
    %v287 = vpack.c.b16 %v278, %v277
    %v288 = vpack.c.b16 %v280, %v279
    %297 = vmatprep.subr.bf16.mxu0 0
    %298 = vmatpush1.bf16.msra.mxu0 %v288
    %299 = vmatprep.subr.bf16.mxu0 0
    %300 = vmatpush1.bf16.msra.mxu0 %v287
    %301 = vmatprep.subr.bf16.mxu0 0
    %302 = vmatpush1.bf16.msra.mxu0 %v286
    %303 = vmatprep.subr.bf16.mxu0 0
    %304 = vmatpush1.bf16.msra.mxu0 %v285
    %305 = vmatprep.subr.bf16.mxu0 0
    %306 = vmatpush1.bf16.msra.mxu0 %v284
    %307 = vmatprep.subr.bf16.mxu0 0
    %308 = vmatpush1.bf16.msra.mxu0 %v283
    %309 = vmatprep.subr.bf16.mxu0 0
    %310 = vmatpush1.bf16.msra.mxu0 %v282
    %311 = vmatprep.subr.bf16.mxu0 0
    %312 = vmatpush1.bf16.msra.mxu0 %v281
    %313 = vmatprep.subr.bf16.mxu0 0
    %314 = vmatpush2.bf16.msra.mxu0 0
    %315 = vmatprep.subr.bf16.mxu0 0
    %316 = vmatpush2.bf16.msra.mxu0 0
    %317 = vmatprep.subr.bf16.mxu0 0
    %318 = vmatpush2.bf16.msra.mxu0 0
    %319 = vmatprep.subr.bf16.mxu0 0
    %320 = vmatpush2.bf16.msra.mxu0 0
    %321 = vmatprep.subr.bf16.mxu0 0
    %322 = vmatpush2.bf16.msra.mxu0 0
    %323 = vmatprep.subr.bf16.mxu0 0
    %324 = vmatpush2.bf16.msra.mxu0 0
    %325 = vmatprep.subr.bf16.mxu0 0
    %326 = vmatpush2.bf16.msra.mxu0 0
    %327 = vmatprep.subr.bf16.mxu0 0
    %328 = vmatpush2.bf16.msra.mxu0 0
    %329 = vmatprep.mubr.bf16.mxu0 0
    %330 = vmatmul.mubr.bf16.gmra.mxu0 %v226
    %v331 = vpop.f32.mrf.mxu0
    %v332 = vadd.f32 %v247, %v331
    %v333 = vpop.f32.mrf.mxu0
    %v334 = vpop.f32.mrf.mxu0
    %v335 = vadd.f32 %v247, %v334
    %v336 = vpop.f32.mrf.mxu0
    %337 = vdwg.mxu0
    %v338 = vpack.c.bf16 %v335, %v332
    %v340 = vunpack.c.l.b16 %v338
    %v341 = vunpack.c.h.b16 %v338
    %v342 = vpack.c.b16 %v340, %v340
    %v343 = vpack.c.b16 %v341, %v341
    %vm346 = vcmask 60416
    %347 = vst.msk [vmem:[#allocation2] sm:$0xf] %vm346, %v342
    %348 = vst.msk [vmem:[#allocation2 + $0x4] sm:$0xf] %vm346, %v343
    // Predicated region
    $region34: #{_forward_impl.1} parent=1 // pred_check
      _
    $region35: #{_forward_impl.1} parent=1 // pred_check_branch
      %350 = sbr.rel (0) target = $region37
    $region36: #{_forward_impl.1} parent=1 // pred_region
      %s352 = ssub.s32 128, 128
      %353 = vsyncadd [#allocation3], %s352
      %s354 = sshll.u32 [#allocation2], 4
      %s355 = int_to_ptr.vmem [resolvable:$true] %s354
      %360 = dma.vmem_to_hbm [thread:$0]  %s355, 128, %s8, [#allocation3], 64, 64, 4
    $region37: #{_forward_impl.1} parent=1 // pred_fallthru
      _
    // Predicated region
    $region38: #{_forward_impl.1} parent=1 // pred_check
      _
    $region39: #{_forward_impl.1} parent=1 // pred_check_branch
      %362 = sbr.rel (0) target = $region41
    $region40: #{_forward_impl.1} parent=1 // pred_region
      %363 = dma.done [#allocation3], 128
    $region41: #{_forward_impl.1} parent=1 // pred_fallthru
      _
    %364 = vsyncpa [#allocation3], 1

// kernel: _forward_impl.1
$region0: #{_forward_impl.1}
  #allocation0 [shape = 'u32[]', space=smem, size = 0x4, offset = 0x4, fixed_abs, tag = 'smem constant byte address 0x4 - core index']
  #allocation1 [shape = 'u32[144,128]{1,0:T(1,128)}', space=vmem, size = 0x12000, scoped, tag = 'internal scratch']
  %s0 = inlined_call_operand.vmem [shape: f32[16,16], index: 0, kind: input, shape index: {}]
  %s1 = inlined_call_operand.vmem [shape: f32[16,1], index: 1, kind: input, shape index: {}]
  %s2 = inlined_call_operand.vmem [shape: bf16[16,128], index: 2, kind: input, shape index: {}]
  %s3 = inlined_call_operand.vmem [shape: f32[1,128], index: 3, kind: input, shape index: {}]
  %s4 = inlined_call_operand.vmem [shape: bf16[128,128], index: 4, kind: input, shape index: {}]
  %s5 = inlined_call_operand.vmem [shape: f32[1,128], index: 5, kind: input, shape index: {}]
  %s6 = inlined_call_operand.vmem [shape: bf16[128,8], index: 6, kind: input, shape index: {}]
  %s7 = inlined_call_operand.vmem [shape: f32[1,8], index: 7, kind: input, shape index: {}]
  %s8 = inlined_call_operand.hbm [shape: bf16[16,8], index: 8, kind: output, shape index: {}]
  %s9 = sld [smem:[#allocation0]]
  $region42: #{_forward_impl.1} parent=0
    _
  %s11 = ssub.s32 1, %s9
  %s12 = scalar_select 0, %s11, %s9
  $region1: #{_forward_impl.1} parent=0
    #allocation2 [shape = 'u8[4096]{0}', space=vmem, size = 0x1000, scoped, tag = 'output window, operand 0, single buffered']
    #allocation3 [shape = 's32[1]{0}', space=sflag, size = 0x4, scoped, tag = 'scoped memory for _forward_impl.1']
    %13 = vsyncpa [#allocation3], 0
    // Predicated region
    $region2: #{_forward_impl.1} parent=1 // pred_check
      _
    $region3: #{_forward_impl.1} parent=1 // pred_check_branch
      %15 = sbr.rel (0) target = $region5
    $region4: #{_forward_impl.1} parent=1 // pred_region
      _
    $region5: #{_forward_impl.1} parent=1 // pred_fallthru
      _
    // Predicated region
    $region6: #{_forward_impl.1} parent=1 // pred_check
      _
    $region7: #{_forward_impl.1} parent=1 // pred_check_branch
      %17 = sbr.rel (0) target = $region9
    $region8: #{_forward_impl.1} parent=1 // pred_region
      _
    $region9: #{_forward_impl.1} parent=1 // pred_fallthru
      _
    // Predicated region
    $region10: #{_forward_impl.1} parent=1 // pred_check
      _
    $region11: #{_forward_impl.1} parent=1 // pred_check_branch
      %19 = sbr.rel (0) target = $region13
    $region12: #{_forward_impl.1} parent=1 // pred_region
      _
    $region13: #{_forward_impl.1} parent=1 // pred_fallthru
      _
    // Predicated region
    $region14: #{_forward_impl.1} parent=1 // pred_check
      _
    $region15: #{_forward_impl.1} parent=1 // pred_check_branch
      %21 = sbr.rel (0) target = $region17
    $region16: #{_forward_impl.1} parent=1 // pred_region
      _
    $region17: #{_forward_impl.1} parent=1 // pred_fallthru
      _
    // Predicated region
    $region18: #{_forward_impl.1} parent=1 // pred_check
      _
    $region19: #{_forward_impl.1} parent=1 // pred_check_branch
      %23 = sbr.rel (0) target = $region21
    $region20: #{_forward_impl.1} parent=1 // pred_region
      _
    $region21: #{_forward_impl.1} parent=1 // pred_fallthru
      _
    // Predicated region
    $region22: #{_forward_impl.1} parent=1 // pred_check
      _
    $region23: #{_forward_impl.1} parent=1 // pred_check_branch
      %25 = sbr.rel (0) target = $region25
    $region24: #{_forward_impl.1} parent=1 // pred_region
      _
    $region25: #{_forward_impl.1} parent=1 // pred_fallthru
      _
    // Predicated region
    $region26: #{_forward_impl.1} parent=1 // pred_check
      _
    $region27: #{_forward_impl.1} parent=1 // pred_check_branch
      %27 = sbr.rel (0) target = $region29
    $region28: #{_forward_impl.1} parent=1 // pred_region
      _
    $region29: #{_forward_impl.1} parent=1 // pred_fallthru
      _
    // Predicated region
    $region30: #{_forward_impl.1} parent=1 // pred_check
      _
    $region31: #{_forward_impl.1} parent=1 // pred_check_branch
      %29 = sbr.rel (0) target = $region33
    $region32: #{_forward_impl.1} parent=1 // pred_region
      _
    $region33: #{_forward_impl.1} parent=1 // pred_fallthru
      _
    %v31 = vld [vmem:[%s3] sm:$0x1]
    %v32 = vld [vmem:[%s5] sm:$0x1]
    %v33 = vld [vmem:[%s7] sm:$0x1]
    %v34 = vld [vmem:[%s0] sm:$0xff]
    %v35 = vld [vmem:[%s0 + $0x8] sm:$0xff]
    %v36 = vpack.c.bf16 %v35, %v34
    %v37 = vld [vmem:[%s2] sm:$0xf]
    %v38 = vld [vmem:[%s2 + $0x4] sm:$0xf]
    %v40 = vlaneseq
    %v41 = vshrl.u32 %v40, 7
    %v42 = vsub.s32 0, %v41
    %v43 = vrot.slane %v31, %v42
    %v47 = vunpack.c.l.b16 %v37
    %v48 = vunpack.c.l.b16 %v38
    %v49 = vpack.c.b16 %v48, %v47
    %vm51 = vcmask 130048
    %v53 = vsel %vm51, %v36, 0
    %55 = vmatprep.subr.bf16.mxu0 0
    %56 = vmatpush1.bf16.msra.mxu0 0
    %57 = vmatprep.subr.bf16.mxu0 0
    %58 = vmatpush1.bf16.msra.mxu0 0
    %59 = vmatprep.subr.bf16.mxu0 0
    %60 = vmatpush1.bf16.msra.mxu0 0
    %61 = vmatprep.subr.bf16.mxu0 0
    %62 = vmatpush1.bf16.msra.mxu0 0
    %63 = vmatprep.subr.bf16.mxu0 0
    %64 = vmatpush1.bf16.msra.mxu0 0
    %65 = vmatprep.subr.bf16.mxu0 0
    %66 = vmatpush1.bf16.msra.mxu0 0
    %67 = vmatprep.subr.bf16.mxu0 0
    %68 = vmatpush1.bf16.msra.mxu0 0
    %69 = vmatprep.subr.bf16.mxu0 0
    %70 = vmatpush1.bf16.msra.mxu0 %v49
    %71 = vmatprep.subr.bf16.mxu0 0
    %72 = vmatpush2.bf16.msra.mxu0 0
    %73 = vmatprep.subr.bf16.mxu0 0
    %74 = vmatpush2.bf16.msra.mxu0 0
    %75 = vmatprep.subr.bf16.mxu0 0
    %76 = vmatpush2.bf16.msra.mxu0 0
    %77 = vmatprep.subr.bf16.mxu0 0
    %78 = vmatpush2.bf16.msra.mxu0 0
    %79 = vmatprep.subr.bf16.mxu0 0
    %80 = vmatpush2.bf16.msra.mxu0 0
    %81 = vmatprep.subr.bf16.mxu0 0
    %82 = vmatpush2.bf16.msra.mxu0 0
    %83 = vmatprep.subr.bf16.mxu0 0
    %84 = vmatpush2.bf16.msra.mxu0 0
    %85 = vmatprep.subr.bf16.mxu0 0
    %86 = vmatpush2.bf16.msra.mxu0 0
    %87 = vmatprep.mubr.bf16.mxu0 0
    %88 = vmatmul.mubr.bf16.gmra.mxu0 %v53
    %v89 = vpop.f32.mrf.mxu0
    %v90 = vadd.f32 %v43, %v89
    %v91 = vpop.f32.mrf.mxu0
    %v92 = vpop.f32.mrf.mxu0
    %v93 = vadd.f32 %v43, %v92
    %v94 = vpop.f32.mrf.mxu0
    %95 = vdwg.mxu0
    %v96 = vtanh.pop %v90
    %v97 = vtanh.pop %v93
    %v98 = vld [vmem:[%s1] sm:$0xff]
    %v99 = vld [vmem:[%s1 + $0x8] sm:$0xff]
    %101 = vset.pattern.permute.xlu0 0
    %102 = vperm.xlu0 %101, %v98
    %v103 = vpop.permute.xlu0 %102
    %106 = vset.pattern.permute.xlu0 0
    %107 = vperm.xlu0 %106, %v99
    %v108 = vpop.permute.xlu0 %107
    %v110 = vmul.f32 %v96, %v103
    %v111 = vmul.f32 %v97, %v108
    %v112 = vpack.c.bf16 %v111, %v110
    %v113 = vld [vmem:[%s4] sm:$0xf]
    %v114 = vld [vmem:[%s4 + $0x4] sm:$0xf]
    %v115 = vld [vmem:[%s4 + $0x8] sm:$0xf]
    %v116 = vld [vmem:[%s4 + $0xc] sm:$0xf]
    %v117 = vld [vmem:[%s4 + $0x10] sm:$0xf]
    %v118 = vld [vmem:[%s4 + $0x14] sm:$0xf]
    %v119 = vld [vmem:[%s4 + $0x18] sm:$0xf]
    %v120 = vld [vmem:[%s4 + $0x1c] sm:$0xf]
    %v121 = vld [vmem:[%s4 + $0x20] sm:$0xf]
    %v122 = vld [vmem:[%s4 + $0x24] sm:$0xf]
    %v123 = vld [vmem:[%s4 + $0x28] sm:$0xf]
    %v124 = vld [vmem:[%s4 + $0x2c] sm:$0xf]
    %v125 = vld [vmem:[%s4 + $0x30] sm:$0xf]
    %v126 = vld [vmem:[%s4 + $0x34] sm:$0xf]
    %v127 = vld [vmem:[%s4 + $0x38] sm:$0xf]
    %v128 = vld [vmem:[%s4 + $0x3c] sm:$0xf]
    %v130 = vlaneseq
    %v131 = vshrl.u32 %v130, 7
    %v132 = vsub.s32 0, %v131
    %v133 = vrot.slane %v32, %v132
    %v151 = vunpack.c.l.b16 %v113
    %v152 = vunpack.c.l.b16 %v114
    %v153 = vunpack.c.l.b16 %v115
    %v154 = vunpack.c.l.b16 %v116
    %v155 = vunpack.c.l.b16 %v117
    %v156 = vunpack.c.l.b16 %v118
    %v157 = vunpack.c.l.b16 %v119
    %v158 = vunpack.c.l.b16 %v120
    %v159 = vunpack.c.l.b16 %v121
    %v160 = vunpack.c.l.b16 %v122
    %v161 = vunpack.c.l.b16 %v123
    %v162 = vunpack.c.l.b16 %v124
    %v163 = vunpack.c.l.b16 %v125
    %v164 = vunpack.c.l.b16 %v126
    %v165 = vunpack.c.l.b16 %v127
    %v166 = vunpack.c.l.b16 %v128
    %v167 = vpack.c.b16 %v152, %v151
    %v168 = vpack.c.b16 %v154, %v153
    %v169 = vpack.c.b16 %v156, %v155
    %v170 = vpack.c.b16 %v158, %v157
    %v171 = vpack.c.b16 %v160, %v159
    %v172 = vpack.c.b16 %v162, %v161
    %v173 = vpack.c.b16 %v164, %v163
    %v174 = vpack.c.b16 %v166, %v165
    %183 = vmatprep.subr.bf16.mxu0 0
    %184 = vmatpush1.bf16.msra.mxu0 %v174
    %185 = vmatprep.subr.bf16.mxu0 0
    %186 = vmatpush1.bf16.msra.mxu0 %v173
    %187 = vmatprep.subr.bf16.mxu0 0
    %188 = vmatpush1.bf16.msra.mxu0 %v172
    %189 = vmatprep.subr.bf16.mxu0 0
    %190 = vmatpush1.bf16.msra.mxu0 %v171
    %191 = vmatprep.subr.bf16.mxu0 0
    %192 = vmatpush1.bf16.msra.mxu0 %v170
    %193 = vmatprep.subr.bf16.mxu0 0
    %194 = vmatpush1.bf16.msra.mxu0 %v169
    %195 = vmatprep.subr.bf16.mxu0 0
    %196 = vmatpush1.bf16.msra.mxu0 %v168
    %197 = vmatprep.subr.bf16.mxu0 0
    %198 = vmatpush1.bf16.msra.mxu0 %v167
    %199 = vmatprep.subr.bf16.mxu0 0
    %200 = vmatpush2.bf16.msra.mxu0 0
    %201 = vmatprep.subr.bf16.mxu0 0
    %202 = vmatpush2.bf16.msra.mxu0 0
    %203 = vmatprep.subr.bf16.mxu0 0
    %204 = vmatpush2.bf16.msra.mxu0 0
    %205 = vmatprep.subr.bf16.mxu0 0
    %206 = vmatpush2.bf16.msra.mxu0 0
    %207 = vmatprep.subr.bf16.mxu0 0
    %208 = vmatpush2.bf16.msra.mxu0 0
    %209 = vmatprep.subr.bf16.mxu0 0
    %210 = vmatpush2.bf16.msra.mxu0 0
    %211 = vmatprep.subr.bf16.mxu0 0
    %212 = vmatpush2.bf16.msra.mxu0 0
    %213 = vmatprep.subr.bf16.mxu0 0
    %214 = vmatpush2.bf16.msra.mxu0 0
    %215 = vmatprep.mubr.bf16.mxu0 0
    %216 = vmatmul.mubr.bf16.gmra.mxu0 %v112
    %v217 = vpop.f32.mrf.mxu0
    %v218 = vadd.f32 %v133, %v217
    %v219 = vpop.f32.mrf.mxu0
    %v220 = vpop.f32.mrf.mxu0
    %v221 = vadd.f32 %v133, %v220
    %v222 = vpop.f32.mrf.mxu0
    %223 = vdwg.mxu0
    %v224 = vmax.f32 %v218, 0.0
    %v225 = vmax.f32 %v221, 0.0
    %v226 = vpack.c.bf16 %v225, %v224
    %v227 = vld [vmem:[%s6] sm:$0xf]
    %v228 = vld [vmem:[%s6 + $0x4] sm:$0xf]
    %v229 = vld [vmem:[%s6 + $0x8] sm:$0xf]
    %v230 = vld [vmem:[%s6 + $0xc] sm:$0xf]
    %v231 = vld [vmem:[%s6 + $0x10] sm:$0xf]
    %v232 = vld [vmem:[%s6 + $0x14] sm:$0xf]
    %v233 = vld [vmem:[%s6 + $0x18] sm:$0xf]
    %v234 = vld [vmem:[%s6 + $0x1c] sm:$0xf]
    %v235 = vld [vmem:[%s6 + $0x20] sm:$0xf]
    %v236 = vld [vmem:[%s6 + $0x24] sm:$0xf]
    %v237 = vld [vmem:[%s6 + $0x28] sm:$0xf]
    %v238 = vld [vmem:[%s6 + $0x2c] sm:$0xf]
    %v239 = vld [vmem:[%s6 + $0x30] sm:$0xf]
    %v240 = vld [vmem:[%s6 + $0x34] sm:$0xf]
    %v241 = vld [vmem:[%s6 + $0x38] sm:$0xf]
    %v242 = vld [vmem:[%s6 + $0x3c] sm:$0xf]
    %v244 = vlaneseq
    %v245 = vshrl.u32 %v244, 7
    %v246 = vsub.s32 0, %v245
    %v247 = vrot.slane %v33, %v246
    %v265 = vunpack.c.l.b16 %v227
    %v266 = vunpack.c.l.b16 %v228
    %v267 = vunpack.c.l.b16 %v229
    %v268 = vunpack.c.l.b16 %v230
    %v269 = vunpack.c.l.b16 %v231
    %v270 = vunpack.c.l.b16 %v232
    %v271 = vunpack.c.l.b16 %v233
    %v272 = vunpack.c.l.b16 %v234
    %v273 = vunpack.c.l.b16 %v235
    %v274 = vunpack.c.l.b16 %v236
    %v275 = vunpack.c.l.b16 %v237
    %v276 = vunpack.c.l.b16 %v238
    %v277 = vunpack.c.l.b16 %v239
    %v278 = vunpack.c.l.b16 %v240
    %v279 = vunpack.c.l.b16 %v241
    %v280 = vunpack.c.l.b16 %v242
    %v281 = vpack.c.b16 %v266, %v265
    %v282 = vpack.c.b16 %v268, %v267
    %v283 = vpack.c.b16 %v270, %v269
    %v284 = vpack.c.b16 %v272, %v271
    %v285 = vpack.c.b16 %v274, %v273
    %v286 = vpack.c.b16 %v276, %v275
    %v287 = vpack.c.b16 %v278, %v277
    %v288 = vpack.c.b16 %v280, %v279
    %297 = vmatprep.subr.bf16.mxu0 0
    %298 = vmatpush1.bf16.msra.mxu0 %v288
    %299 = vmatprep.subr.bf16.mxu0 0
    %300 = vmatpush1.bf16.msra.mxu0 %v287
    %301 = vmatprep.subr.bf16.mxu0 0
    %302 = vmatpush1.bf16.msra.mxu0 %v286
    %303 = vmatprep.subr.bf16.mxu0 0
    %304 = vmatpush1.bf16.msra.mxu0 %v285
    %305 = vmatprep.subr.bf16.mxu0 0
    %306 = vmatpush1.bf16.msra.mxu0 %v284
    %307 = vmatprep.subr.bf16.mxu0 0
    %308 = vmatpush1.bf16.msra.mxu0 %v283
    %309 = vmatprep.subr.bf16.mxu0 0
    %310 = vmatpush1.bf16.msra.mxu0 %v282
    %311 = vmatprep.subr.bf16.mxu0 0
    %312 = vmatpush1.bf16.msra.mxu0 %v281
    %313 = vmatprep.subr.bf16.mxu0 0
    %314 = vmatpush2.bf16.msra.mxu0 0
    %315 = vmatprep.subr.bf16.mxu0 0
    %316 = vmatpush2.bf16.msra.mxu0 0
    %317 = vmatprep.subr.bf16.mxu0 0
    %318 = vmatpush2.bf16.msra.mxu0 0
    %319 = vmatprep.subr.bf16.mxu0 0
    %320 = vmatpush2.bf16.msra.mxu0 0
    %321 = vmatprep.subr.bf16.mxu0 0
    %322 = vmatpush2.bf16.msra.mxu0 0
    %323 = vmatprep.subr.bf16.mxu0 0
    %324 = vmatpush2.bf16.msra.mxu0 0
    %325 = vmatprep.subr.bf16.mxu0 0
    %326 = vmatpush2.bf16.msra.mxu0 0
    %327 = vmatprep.subr.bf16.mxu0 0
    %328 = vmatpush2.bf16.msra.mxu0 0
    %329 = vmatprep.mubr.bf16.mxu0 0
    %330 = vmatmul.mubr.bf16.gmra.mxu0 %v226
    %v331 = vpop.f32.mrf.mxu0
    %v332 = vadd.f32 %v247, %v331
    %v333 = vpop.f32.mrf.mxu0
    %v334 = vpop.f32.mrf.mxu0
    %v335 = vadd.f32 %v247, %v334
    %v336 = vpop.f32.mrf.mxu0
    %337 = vdwg.mxu0
    %v338 = vpack.c.bf16 %v335, %v332
    %v340 = vunpack.c.l.b16 %v338
    %v341 = vunpack.c.h.b16 %v338
    %v342 = vpack.c.b16 %v340, %v340
    %v343 = vpack.c.b16 %v341, %v341
    %vm346 = vcmask 60416
    %347 = vst.msk [vmem:[#allocation2] sm:$0xf] %vm346, %v342
    %348 = vst.msk [vmem:[#allocation2 + $0x4] sm:$0xf] %vm346, %v343
    // Predicated region
    $region34: #{_forward_impl.1} parent=1 // pred_check
      _
    $region35: #{_forward_impl.1} parent=1 // pred_check_branch
      %350 = sbr.rel (0) target = $region37
    $region36: #{_forward_impl.1} parent=1 // pred_region
      %s352 = ssub.s32 128, 128
      %353 = vsyncadd [#allocation3], %s352
      %s354 = sshll.u32 [#allocation2], 4
      %s355 = int_to_ptr.vmem [resolvable:$true] %s354
      %360 = dma.vmem_to_hbm [thread:$0]  %s355, 128, %s8, [#allocation3], 64, 64, 4
    $region37: #{_forward_impl.1} parent=1 // pred_fallthru
      _
    // Predicated region
    $region38: #{_forward_impl.1} parent=1 // pred_check
      _
    $region39: #{_forward_impl.1} parent=1 // pred_check_branch
      %362 = sbr.rel (0) target = $region41
    $region40: #{_forward_impl.1} parent=1 // pred_region
      %363 = dma.done [#allocation3], 128
    $region41: #{_forward_impl.1} parent=1 // pred_fallthru
      _
    %364 = vsyncpa [#allocation3], 1

</llo_original>
